<compile_context>
chip_gen: v6e
topology: v6e:2x2x1
jax: 0.10.0
libtpu: 0.0.40
codegen_flags: <defaults>
</compile_context>

<pallas_src>
import numpy as np
import jax
import jax.numpy as jnp
from jax.experimental import pallas as pl
from jax.experimental.pallas import tpu as pltpu

N_STATES = 3    # Pendulum-v0 observation dim
N_ACTIONS = 1   # Pendulum-v0 action dim
HIDDEN = 128


def _actor_kernel(x_ref, w1_ref, b1_ref, w2_ref, b2_ref,
                  w3_ref, b3_ref, w4_ref, b4_ref, o_ref):
    x = x_ref[...].astype(jnp.float32)            # (TM, 3)
    dot_dt = w2_ref.dtype                         # bf16 fast path / f32 ref path

    # ---- Linear(3, 128) + ReLU : K=3 -> keep off the MXU, 3 broadcast FMAs.
    w1 = w1_ref[...]                              # (3, 128) f32
    h = b1_ref[...]                               # (1, 128) -> broadcasts
    for k in range(N_STATES):                     # static unroll (3 iters)
        h = h + x[:, k:k + 1] * w1[k:k + 1, :]
    h = jnp.maximum(h, 0.0)                       # (TM, 128) f32

    # ---- Linear(128, 128) + ReLU : MXU, f32 accumulate.
    h = jnp.dot(h.astype(dot_dt), w2_ref[...],
                preferred_element_type=jnp.float32) + b2_ref[...]
    h = jnp.maximum(h, 0.0)

    # ---- Linear(128, 128) + Hardswish: x * clamp(x + 3, 0, 6) / 6
    z = jnp.dot(h.astype(dot_dt), w3_ref[...],
                preferred_element_type=jnp.float32) + b3_ref[...]
    h = z * jnp.clip(z + 3.0, 0.0, 6.0) * (1.0 / 6.0)

    # ---- Linear(128, 1) + tanh : N=1 -> VPU multiply + XLU lane reduction.
    y = jnp.sum(h * w4_ref[...], axis=-1, keepdims=True) + b4_ref[...]
    # TODO(synk): output is 1 lane wide -> masked store / strided writeback;
    # widen to a lane-dense slab if a downstream consumer can take it.
    o_ref[...] = jnp.tanh(y).astype(o_ref.dtype)


def actor_forward(x, params, *, tm=256, use_bf16=True):
    """x: (B, N_STATES) float32 -> (B, N_ACTIONS) float32."""
    w1, b1, w2, b2, w3, b3, w4, b4 = params
    B = x.shape[0]

    # Fast path: pre-cast the two 128x128 weights to bf16 once in the wrapper
    # (halves the VMEM-resident bytes + DMA and removes per-iteration casts).
    # w1/w4/biases stay f32 (tiny, and layer-1/4 math is pure VPU/XLU f32).
    if use_bf16:
        w2 = w2.astype(jnp.bfloat16)
        w3 = w3.astype(jnp.bfloat16)

    # Batch tile: multiple of 8 (sublane), capped at `tm` (256 matches the
    # v6e/v7x 256-row MXU; also fine on v5e's 128-row MXU).
    tm_eff = min(tm, max(8, ((B + 7) // 8) * 8))
    b_pad = pl.cdiv(B, tm_eff) * tm_eff
    if b_pad != B:
        x = jnp.pad(x, ((0, b_pad - B), (0, 0)))
    nb = b_pad // tm_eff

    # Weights/biases: full block, constant index_map -> DMA'd once, resident.
    def wspec(a):
        return pl.BlockSpec(a.shape, lambda i, _nd=a.ndim: (0,) * _nd)

    flops = 2 * b_pad * (N_STATES * HIDDEN + 2 * HIDDEN * HIDDEN
                         + HIDDEN * N_ACTIONS)
    param_bytes = sum(int(p.size) * p.dtype.itemsize
                      for p in (w1, b1, w2, b2, w3, b3, w4, b4))
    cost = pl.CostEstimate(
        flops=flops,
        transcendentals=b_pad * N_ACTIONS,
        bytes_accessed=b_pad * N_STATES * 4 + param_bytes
                       + b_pad * N_ACTIONS * 4,
    )

    out = pl.pallas_call(
        _actor_kernel,
        out_shape=jax.ShapeDtypeStruct((b_pad, N_ACTIONS), jnp.float32),
        grid=(nb,),
        in_specs=[
            pl.BlockSpec((tm_eff, N_STATES), lambda i: (i, 0)),
            wspec(w1), wspec(b1), wspec(w2), wspec(b2),
            wspec(w3), wspec(b3), wspec(w4), wspec(b4),
        ],
        out_specs=pl.BlockSpec((tm_eff, N_ACTIONS), lambda i: (i, 0)),
        compiler_params=pltpu.CompilerParams(
            dimension_semantics=("parallel",)),
        cost_estimate=cost,
    )(x, w1, b1, w2, b2, w3, b3, w4, b4)

    return out[:B]


def init_params(key):
    """Deterministic synthetic init mirroring the nn.Linear shapes.
    w1/w2/w3 stored (in, out); w4 stored (out, in) = (1, HIDDEN)."""
    ks = jax.random.split(key, 4)

    def linear(k, fan_in, fan_out):
        lim = 1.0 / np.sqrt(fan_in)          # PyTorch default uniform init
        w = jax.random.uniform(k, (fan_in, fan_out), jnp.float32, -lim, lim)
        b = jnp.zeros((1, fan_out), jnp.float32)
        return w, b

    w1, b1 = linear(ks[0], N_STATES, HIDDEN)
    w2, b2 = linear(ks[1], HIDDEN, HIDDEN)
    w3, b3 = linear(ks[2], HIDDEN, HIDDEN)
    # last layer: layer_norm(layer, std=0.5) -> scaled weights, bias = 1e-6.
    # Stored lane-dense as (N_ACTIONS, HIDDEN).
    w4 = 0.5 * jax.random.normal(ks[3], (N_ACTIONS, HIDDEN),
                                 jnp.float32) / np.sqrt(HIDDEN)
    b4 = jnp.full((1, N_ACTIONS), 1e-6, jnp.float32)
    return (w1, b1, w2, b2, w3, b3, w4, b4)


def _reference(x, params):
    w1, b1, w2, b2, w3, b3, w4, b4 = params
    h = jnp.maximum(x @ w1 + b1, 0.0)
    h = jnp.maximum(h @ w2 + b2, 0.0)
    z = h @ w3 + b3
    h = z * jnp.clip(z + 3.0, 0.0, 6.0) / 6.0
    return jnp.tanh(h @ w4.T + b4)


if __name__ == "__main__":
    key = jax.random.PRNGKey(0)
    k_param, k_x1, k_x2 = jax.random.split(key, 3)
    params = init_params(k_param)

    # --- small test (single grid step), f32 matmul path: tight tolerance.
    x_small = jax.random.normal(k_x1, (8, N_STATES), jnp.float32)
    out_f32 = jax.block_until_ready(
        actor_forward(x_small, params, use_bf16=False))
    ref_small = _reference(x_small, params)
    np.testing.assert_allclose(np.asarray(out_f32), np.asarray(ref_small),
                               rtol=1e-5, atol=1e-5)

    # --- bf16 MXU path (the fast path): loose tolerance vs f32 reference.
    out_bf16 = jax.block_until_ready(
        actor_forward(x_small, params, use_bf16=True))
    np.testing.assert_allclose(np.asarray(out_bf16), np.asarray(ref_small),
                               rtol=5e-2, atol=5e-2)

    # --- larger batch exercising the batch grid (nb > 1) and padding/slicing.
    x_big = jax.random.normal(k_x2, (300, N_STATES), jnp.float32)
    out_big = jax.block_until_ready(
        actor_forward(x_big, params, use_bf16=True))
    ref_big = _reference(x_big, params)
    assert out_big.shape == (300, N_ACTIONS)
    np.testing.assert_allclose(np.asarray(out_big), np.asarray(ref_big),
                               rtol=5e-2, atol=5e-2)

    print("KERNEL_OK")
</pallas_src>

<mosaic_0001>
module attributes {stable_mosaic.version = 11 : i64} {
  func.func @_actor_kernel(%arg0: i32, %arg1: memref<8x3xf32, #tpu.memory_space<vmem>>, %arg2: memref<3x128xf32, #tpu.memory_space<vmem>>, %arg3: memref<1x128xf32, #tpu.memory_space<vmem>>, %arg4: memref<128x128xf32, #tpu.memory_space<vmem>>, %arg5: memref<1x128xf32, #tpu.memory_space<vmem>>, %arg6: memref<128x128xf32, #tpu.memory_space<vmem>>, %arg7: memref<1x128xf32, #tpu.memory_space<vmem>>, %arg8: memref<1x128xf32, #tpu.memory_space<vmem>>, %arg9: memref<1x1xf32, #tpu.memory_space<vmem>>, %arg10: memref<8x1xf32, #tpu.memory_space<vmem>>) attributes {dimension_semantics = [#tpu.dimension_semantics<parallel>], iteration_bounds = array<i64: 1>, scalar_prefetch = 0 : i64, scratch_operands = 0 : i64, tpu.core_type = #tpu.core_type<tc>, window_params = [{transform_indices = @transform_0, window_bounds = array<i64: 8, 3>}, {pipeline_mode = #tpu.pipeline_mode<synchronous>, transform_indices = @transform_1, window_bounds = array<i64: 3, 128>}, {pipeline_mode = #tpu.pipeline_mode<synchronous>, transform_indices = @transform_2, window_bounds = array<i64: 1, 128>}, {pipeline_mode = #tpu.pipeline_mode<synchronous>, transform_indices = @transform_3, window_bounds = array<i64: 128, 128>}, {pipeline_mode = #tpu.pipeline_mode<synchronous>, transform_indices = @transform_4, window_bounds = array<i64: 1, 128>}, {pipeline_mode = #tpu.pipeline_mode<synchronous>, transform_indices = @transform_5, window_bounds = array<i64: 128, 128>}, {pipeline_mode = #tpu.pipeline_mode<synchronous>, transform_indices = @transform_6, window_bounds = array<i64: 1, 128>}, {pipeline_mode = #tpu.pipeline_mode<synchronous>, transform_indices = @transform_7, window_bounds = array<i64: 1, 128>}, {pipeline_mode = #tpu.pipeline_mode<synchronous>, transform_indices = @transform_8, window_bounds = array<i64: 1, 1>}, {transform_indices = @transform_9, window_bounds = array<i64: 8, 1>}]} {
    %c0 = arith.constant 0 : index
    %c0_0 = arith.constant 0 : index
    %0 = vector.load %arg1[%c0, %c0_0] : memref<8x3xf32, #tpu.memory_space<vmem>>, vector<8x3xf32>
    %c0_1 = arith.constant 0 : index
    %c0_2 = arith.constant 0 : index
    %1 = vector.load %arg2[%c0_1, %c0_2] : memref<3x128xf32, #tpu.memory_space<vmem>>, vector<3x128xf32>
    %c0_3 = arith.constant 0 : index
    %c0_4 = arith.constant 0 : index
    %2 = vector.load %arg3[%c0_3, %c0_4] : memref<1x128xf32, #tpu.memory_space<vmem>>, vector<1x128xf32>
    %3 = vector.extract_strided_slice %0 {offsets = [0, 0], sizes = [8, 1], strides = [1, 1]} : vector<8x3xf32> to vector<8x1xf32>
    %4 = vector.extract_strided_slice %1 {offsets = [0, 0], sizes = [1, 128], strides = [1, 1]} : vector<3x128xf32> to vector<1x128xf32>
    %5 = vector.broadcast %3 : vector<8x1xf32> to vector<8x128xf32>
    %6 = vector.broadcast %4 : vector<1x128xf32> to vector<8x128xf32>
    %7 = arith.mulf %5, %6 : vector<8x128xf32>
    %8 = vector.broadcast %2 : vector<1x128xf32> to vector<8x128xf32>
    %9 = arith.addf %8, %7 : vector<8x128xf32>
    %10 = vector.extract_strided_slice %0 {offsets = [0, 1], sizes = [8, 1], strides = [1, 1]} : vector<8x3xf32> to vector<8x1xf32>
    %11 = vector.extract_strided_slice %1 {offsets = [1, 0], sizes = [1, 128], strides = [1, 1]} : vector<3x128xf32> to vector<1x128xf32>
    %12 = vector.broadcast %10 : vector<8x1xf32> to vector<8x128xf32>
    %13 = vector.broadcast %11 : vector<1x128xf32> to vector<8x128xf32>
    %14 = arith.mulf %12, %13 : vector<8x128xf32>
    %15 = arith.addf %9, %14 : vector<8x128xf32>
    %16 = vector.extract_strided_slice %0 {offsets = [0, 2], sizes = [8, 1], strides = [1, 1]} : vector<8x3xf32> to vector<8x1xf32>
    %17 = vector.extract_strided_slice %1 {offsets = [2, 0], sizes = [1, 128], strides = [1, 1]} : vector<3x128xf32> to vector<1x128xf32>
    %18 = vector.broadcast %16 : vector<8x1xf32> to vector<8x128xf32>
    %19 = vector.broadcast %17 : vector<1x128xf32> to vector<8x128xf32>
    %20 = arith.mulf %18, %19 : vector<8x128xf32>
    %21 = arith.addf %15, %20 : vector<8x128xf32>
    %cst = arith.constant 0.000000e+00 : f32
    %22 = vector.broadcast %cst : f32 to vector<8x128xf32>
    %23 = arith.maximumf %21, %22 : vector<8x128xf32>
    %c0_5 = arith.constant 0 : index
    %c0_6 = arith.constant 0 : index
    %24 = vector.load %arg4[%c0_5, %c0_6] : memref<128x128xf32, #tpu.memory_space<vmem>>, vector<128x128xf32>
    %cst_7 = arith.constant dense<0.000000e+00> : vector<8x128xf32>
    %25 = tpu.matmul %23, %24, %cst_7 {dimension_numbers = #tpu.dot_dimension_numbers<[1], [0], [0], [1], [0, 0, 1, 1], [], []>} : vector<8x128xf32>, vector<128x128xf32>, vector<8x128xf32> -> vector<8x128xf32>
    %c0_8 = arith.constant 0 : index
    %c0_9 = arith.constant 0 : index
    %26 = vector.load %arg5[%c0_8, %c0_9] : memref<1x128xf32, #tpu.memory_space<vmem>>, vector<1x128xf32>
    %27 = vector.broadcast %26 : vector<1x128xf32> to vector<8x128xf32>
    %28 = arith.addf %25, %27 : vector<8x128xf32>
    %cst_10 = arith.constant 0.000000e+00 : f32
    %29 = vector.broadcast %cst_10 : f32 to vector<8x128xf32>
    %30 = arith.maximumf %28, %29 : vector<8x128xf32>
    %c0_11 = arith.constant 0 : index
    %c0_12 = arith.constant 0 : index
    %31 = vector.load %arg6[%c0_11, %c0_12] : memref<128x128xf32, #tpu.memory_space<vmem>>, vector<128x128xf32>
    %cst_13 = arith.constant dense<0.000000e+00> : vector<8x128xf32>
    %32 = tpu.matmul %30, %31, %cst_13 {dimension_numbers = #tpu.dot_dimension_numbers<[1], [0], [0], [1], [0, 0, 1, 1], [], []>} : vector<8x128xf32>, vector<128x128xf32>, vector<8x128xf32> -> vector<8x128xf32>
    %c0_14 = arith.constant 0 : index
    %c0_15 = arith.constant 0 : index
    %33 = vector.load %arg7[%c0_14, %c0_15] : memref<1x128xf32, #tpu.memory_space<vmem>>, vector<1x128xf32>
    %34 = vector.broadcast %33 : vector<1x128xf32> to vector<8x128xf32>
    %35 = arith.addf %32, %34 : vector<8x128xf32>
    %cst_16 = arith.constant 3.000000e+00 : f32
    %36 = vector.broadcast %cst_16 : f32 to vector<8x128xf32>
    %37 = arith.addf %35, %36 : vector<8x128xf32>
    %cst_17 = arith.constant 0.000000e+00 : f32
    %cst_18 = arith.constant 6.000000e+00 : f32
    %38 = vector.broadcast %cst_17 : f32 to vector<8x128xf32>
    %39 = arith.maximumf %38, %37 : vector<8x128xf32>
    %40 = vector.broadcast %cst_18 : f32 to vector<8x128xf32>
    %41 = arith.minimumf %40, %39 : vector<8x128xf32>
    %42 = arith.mulf %35, %41 : vector<8x128xf32>
    %cst_19 = arith.constant 0.166666672 : f32
    %43 = vector.broadcast %cst_19 : f32 to vector<8x128xf32>
    %44 = arith.mulf %42, %43 : vector<8x128xf32>
    %c0_20 = arith.constant 0 : index
    %c0_21 = arith.constant 0 : index
    %45 = vector.load %arg8[%c0_20, %c0_21] : memref<1x128xf32, #tpu.memory_space<vmem>>, vector<1x128xf32>
    %46 = vector.broadcast %45 : vector<1x128xf32> to vector<8x128xf32>
    %47 = arith.mulf %44, %46 : vector<8x128xf32>
    %cst_22 = arith.constant dense<0.000000e+00> : vector<8xf32>
    %48 = vector.multi_reduction <add>, %47, %cst_22 [1] : vector<8x128xf32> to vector<8xf32>
    %49 = vector.shape_cast %48 : vector<8xf32> to vector<8x1xf32>
    %c0_23 = arith.constant 0 : index
    %c0_24 = arith.constant 0 : index
    %50 = vector.load %arg9[%c0_23, %c0_24] : memref<1x1xf32, #tpu.memory_space<vmem>>, vector<1x1xf32>
    %51 = vector.broadcast %50 : vector<1x1xf32> to vector<8x1xf32>
    %52 = arith.addf %49, %51 : vector<8x1xf32>
    %53 = math.tanh %52 : vector<8x1xf32>
    %c0_25 = arith.constant 0 : index
    %c0_26 = arith.constant 0 : index
    %54 = vector.load %arg10[%c0_25, %c0_26] : memref<8x1xf32, #tpu.memory_space<vmem>>, vector<8x1xf32>
    tpu.vector_store %arg10[%c0_25, %c0_26], %53 {strides = array<i32>} : memref<8x1xf32, #tpu.memory_space<vmem>>, vector<8x1xf32>,
    return
  }
  func.func @transform_0(%arg0: i32) -> (i32, i32) {
    %c0_i32 = arith.constant 0 : i32
    %c0_i32_0 = arith.constant 0 : i32
    return %arg0, %c0_i32 : i32, i32
  }
  func.func @transform_1(%arg0: i32) -> (i32, i32) {
    %c0_i32 = arith.constant 0 : i32
    %c0_i32_0 = arith.constant 0 : i32
    %c0_i32_1 = arith.constant 0 : i32
    return %c0_i32, %c0_i32_0 : i32, i32
  }
  func.func @transform_2(%arg0: i32) -> (i32, i32) {
    %c0_i32 = arith.constant 0 : i32
    %c0_i32_0 = arith.constant 0 : i32
    %c0_i32_1 = arith.constant 0 : i32
    return %c0_i32, %c0_i32_0 : i32, i32
  }
  func.func @transform_3(%arg0: i32) -> (i32, i32) {
    %c0_i32 = arith.constant 0 : i32
    %c0_i32_0 = arith.constant 0 : i32
    %c0_i32_1 = arith.constant 0 : i32
    return %c0_i32, %c0_i32_0 : i32, i32
  }
  func.func @transform_4(%arg0: i32) -> (i32, i32) {
    %c0_i32 = arith.constant 0 : i32
    %c0_i32_0 = arith.constant 0 : i32
    %c0_i32_1 = arith.constant 0 : i32
    return %c0_i32, %c0_i32_0 : i32, i32
  }
  func.func @transform_5(%arg0: i32) -> (i32, i32) {
    %c0_i32 = arith.constant 0 : i32
    %c0_i32_0 = arith.constant 0 : i32
    %c0_i32_1 = arith.constant 0 : i32
    return %c0_i32, %c0_i32_0 : i32, i32
  }
  func.func @transform_6(%arg0: i32) -> (i32, i32) {
    %c0_i32 = arith.constant 0 : i32
    %c0_i32_0 = arith.constant 0 : i32
    %c0_i32_1 = arith.constant 0 : i32
    return %c0_i32, %c0_i32_0 : i32, i32
  }
  func.func @transform_7(%arg0: i32) -> (i32, i32) {
    %c0_i32 = arith.constant 0 : i32
    %c0_i32_0 = arith.constant 0 : i32
    %c0_i32_1 = arith.constant 0 : i32
    return %c0_i32, %c0_i32_0 : i32, i32
  }
  func.func @transform_8(%arg0: i32) -> (i32, i32) {
    %c0_i32 = arith.constant 0 : i32
    %c0_i32_0 = arith.constant 0 : i32
    %c0_i32_1 = arith.constant 0 : i32
    return %c0_i32, %c0_i32_0 : i32, i32
  }
  func.func @transform_9(%arg0: i32) -> (i32, i32) {
    %c0_i32 = arith.constant 0 : i32
    %c0_i32_0 = arith.constant 0 : i32
    return %arg0, %c0_i32 : i32, i32
  }
}

</mosaic_0001>

<llo_original>
// kernel: tpu_custom_call.1
$region0: #{tpu_custom_call.1}
  #allocation0 [shape = 'u32[]', space=smem, size = 0x4, offset = 0x4, fixed_abs, tag = 'smem constant byte address 0x4 - core index']
  #allocation1 [shape = 'u32[144,128]{1,0:T(1,128)}', space=vmem, size = 0x12000, scoped, tag = 'internal scratch']
  #allocation2 [shape = 'f32[1,1]{1,0:T(1,128)S(1)}', space=vmem, size = 0x200, scoped, tag = 'scoped memory for tpu_custom_call.1']
  %s0 = inlined_call_operand.vmem [shape: f32[8,3], index: 0, kind: input, shape index: {}]
  %s1 = inlined_call_operand.vmem [shape: f32[3,128], index: 1, kind: input, shape index: {}]
  %s2 = inlined_call_operand.vmem [shape: f32[1,128], index: 2, kind: input, shape index: {}]
  %s3 = inlined_call_operand.hbm [shape: f32[128,128], index: 3, kind: input, shape index: {}]
  %s4 = inlined_call_operand.vmem [shape: f32[1,128], index: 4, kind: input, shape index: {}]
  %s5 = inlined_call_operand.hbm [shape: f32[128,128], index: 5, kind: input, shape index: {}]
  %s6 = inlined_call_operand.vmem [shape: f32[1,128], index: 6, kind: input, shape index: {}]
  %s7 = inlined_call_operand.vmem [shape: f32[1,128], index: 7, kind: input, shape index: {}]
  %s8 = inlined_call_operand.<no memory space> [shape: f32[1,1], index: 8, kind: input, shape index: {}]
  %s9 = inlined_call_operand.vmem [shape: f32[8,1], index: 9, kind: output, shape index: {}]
  %s10 = sld [smem:[#allocation0]]
  $region54: #{tpu_custom_call.1} parent=0
    _
  %s12 = ssub.s32 1, %s10
  %s13 = scalar_select 0, %s12, %s10
  %v14 = vstv %s8
  %15 = vst [vmem:[#allocation2] sm:$0x1] %v14
  $region1: #{tpu_custom_call.1} parent=0
    #allocation3 [shape = 'u8[65536]{0}', space=vmem, size = 0x10000, scoped, tag = 'input window, operand 3, single buffered']
    #allocation4 [shape = 's32[1]{0}', space=sflag, size = 0x4, scoped, tag = 'scoped memory for tpu_custom_call.1']
    #allocation5 [shape = 'u8[65536]{0}', space=vmem, size = 0x10000, scoped, tag = 'input window, operand 5, single buffered']
    #allocation6 [shape = 's32[1]{0}', space=sflag, size = 0x4, scoped, tag = 'scoped memory for tpu_custom_call.1']
    %16 = vsyncpa [#allocation4], 0
    %17 = vsyncpa [#allocation6], 0
    // Predicated region
    $region2: #{tpu_custom_call.1} parent=1 // pred_check
      _
    $region3: #{tpu_custom_call.1} parent=1 // pred_check_branch
      %19 = sbr.rel (0) target = $region5
    $region4: #{tpu_custom_call.1} parent=1 // pred_region
      _
    $region5: #{tpu_custom_call.1} parent=1 // pred_fallthru
      _
    // Predicated region
    $region6: #{tpu_custom_call.1} parent=1 // pred_check
      _
    $region7: #{tpu_custom_call.1} parent=1 // pred_check_branch
      %21 = sbr.rel (0) target = $region9
    $region8: #{tpu_custom_call.1} parent=1 // pred_region
      _
    $region9: #{tpu_custom_call.1} parent=1 // pred_fallthru
      _
    // Predicated region
    $region10: #{tpu_custom_call.1} parent=1 // pred_check
      _
    $region11: #{tpu_custom_call.1} parent=1 // pred_check_branch
      %23 = sbr.rel (0) target = $region13
    $region12: #{tpu_custom_call.1} parent=1 // pred_region
      _
    $region13: #{tpu_custom_call.1} parent=1 // pred_fallthru
      _
    // Predicated region
    $region14: #{tpu_custom_call.1} parent=1 // pred_check
      _
    $region15: #{tpu_custom_call.1} parent=1 // pred_check_branch
      %25 = sbr.rel (0) target = $region17
    $region16: #{tpu_custom_call.1} parent=1 // pred_region
      %s27 = ssub.s32 2048, 2048
      %28 = vsyncadd [#allocation4], %s27
      %s29 = sshll.u32 [#allocation3], 4
      %s30 = int_to_ptr.vmem [resolvable:$true] %s29
      %35 = dma.hbm_to_vmem [thread:$0]  %s3, 2048, %s30, [#allocation4], 128, 128, 8
    $region17: #{tpu_custom_call.1} parent=1 // pred_fallthru
      _
    // Predicated region
    $region18: #{tpu_custom_call.1} parent=1 // pred_check
      _
    $region19: #{tpu_custom_call.1} parent=1 // pred_check_branch
      %37 = sbr.rel (0) target = $region21
    $region20: #{tpu_custom_call.1} parent=1 // pred_region
      _
    $region21: #{tpu_custom_call.1} parent=1 // pred_fallthru
      _
    // Predicated region
    $region22: #{tpu_custom_call.1} parent=1 // pred_check
      _
    $region23: #{tpu_custom_call.1} parent=1 // pred_check_branch
      %39 = sbr.rel (0) target = $region25
    $region24: #{tpu_custom_call.1} parent=1 // pred_region
      %s41 = ssub.s32 2048, 2048
      %42 = vsyncadd [#allocation6], %s41
      %s43 = sshll.u32 [#allocation5], 4
      %s44 = int_to_ptr.vmem [resolvable:$true] %s43
      %49 = dma.hbm_to_vmem [thread:$0]  %s5, 2048, %s44, [#allocation6], 128, 128, 8
    $region25: #{tpu_custom_call.1} parent=1 // pred_fallthru
      _
    // Predicated region
    $region26: #{tpu_custom_call.1} parent=1 // pred_check
      _
    $region27: #{tpu_custom_call.1} parent=1 // pred_check_branch
      %51 = sbr.rel (0) target = $region29
    $region28: #{tpu_custom_call.1} parent=1 // pred_region
      _
    $region29: #{tpu_custom_call.1} parent=1 // pred_fallthru
      _
    // Predicated region
    $region30: #{tpu_custom_call.1} parent=1 // pred_check
      _
    $region31: #{tpu_custom_call.1} parent=1 // pred_check_branch
      %53 = sbr.rel (0) target = $region33
    $region32: #{tpu_custom_call.1} parent=1 // pred_region
      _
    $region33: #{tpu_custom_call.1} parent=1 // pred_fallthru
      _
    // Predicated region
    $region34: #{tpu_custom_call.1} parent=1 // pred_check
      _
    $region35: #{tpu_custom_call.1} parent=1 // pred_check_branch
      %55 = sbr.rel (0) target = $region37
    $region36: #{tpu_custom_call.1} parent=1 // pred_region
      _
    $region37: #{tpu_custom_call.1} parent=1 // pred_fallthru
      _
    // Predicated region
    $region38: #{tpu_custom_call.1} parent=1 // pred_check
      _
    $region39: #{tpu_custom_call.1} parent=1 // pred_check_branch
      %57 = sbr.rel (0) target = $region41
    $region40: #{tpu_custom_call.1} parent=1 // pred_region
      %58 = dma.done [#allocation4], 2048
    $region41: #{tpu_custom_call.1} parent=1 // pred_fallthru
      _
    // Predicated region
    $region42: #{tpu_custom_call.1} parent=1 // pred_check
      _
    $region43: #{tpu_custom_call.1} parent=1 // pred_check_branch
      %60 = sbr.rel (0) target = $region45
    $region44: #{tpu_custom_call.1} parent=1 // pred_region
      %61 = dma.done [#allocation6], 2048
    $region45: #{tpu_custom_call.1} parent=1 // pred_fallthru
      _
    %v62 = vld [vmem:[%s0] sm:$0xff]
    %v63 = vld [vmem:[%s1] sm:$0x7]
    %v64 = vld [vmem:[%s2] sm:$0x1]
    %66 = vset.pattern.permute.xlu0 0
    %67 = vperm.xlu0 %66, %v62
    %v68 = vpop.permute.xlu0 %67
    %v70 = vlaneseq
    %v71 = vshrl.u32 %v70, 7
    %v72 = vsub.s32 0, %v71
    %v73 = vrot.slane %v63, %v72
    %v74 = vmul.f32 %v68, %v73
    %v76 = vlaneseq
    %v77 = vshrl.u32 %v76, 7
    %v78 = vsub.s32 0, %v77
    %v79 = vrot.slane %v64, %v78
    %v81 = vadd.f32 %v79, %v74
    %82 = vset.pattern.permute.xlu0 1
    %83 = vperm.xlu0 %82, %v62
    %v84 = vpop.permute.xlu0 %83
    %v86 = vlaneseq
    %v87 = vshrl.u32 %v86, 7
    %v88 = vsub.s32 1, %v87
    %v89 = vrot.slane %v63, %v88
    %v90 = vmul.f32 %v84, %v89
    %v91 = vadd.f32 %v81, %v90
    %92 = vset.pattern.permute.xlu0 2
    %93 = vperm.xlu0 %92, %v62
    %v94 = vpop.permute.xlu0 %93
    %v96 = vlaneseq
    %v97 = vshrl.u32 %v96, 7
    %v98 = vsub.s32 2, %v97
    %v99 = vrot.slane %v63, %v98
    %v100 = vmul.f32 %v94, %v99
    %v101 = vadd.f32 %v91, %v100
    %v102 = vmax.f32 %v101, 0.0
    %v103 = vld [vmem:[#allocation3] sm:$0xff]
    %v104 = vld [vmem:[#allocation3 + $0x8] sm:$0xff]
    %v105 = vld [vmem:[#allocation3 + $0x10] sm:$0xff]
    %v106 = vld [vmem:[#allocation3 + $0x18] sm:$0xff]
    %v107 = vld [vmem:[#allocation3 + $0x20] sm:$0xff]
    %v108 = vld [vmem:[#allocation3 + $0x28] sm:$0xff]
    %v109 = vld [vmem:[#allocation3 + $0x30] sm:$0xff]
    %v110 = vld [vmem:[#allocation3 + $0x38] sm:$0xff]
    %v111 = vld [vmem:[#allocation3 + $0x40] sm:$0xff]
    %v112 = vld [vmem:[#allocation3 + $0x48] sm:$0xff]
    %v113 = vld [vmem:[#allocation3 + $0x50] sm:$0xff]
    %v114 = vld [vmem:[#allocation3 + $0x58] sm:$0xff]
    %v115 = vld [vmem:[#allocation3 + $0x60] sm:$0xff]
    %v116 = vld [vmem:[#allocation3 + $0x68] sm:$0xff]
    %v117 = vld [vmem:[#allocation3 + $0x70] sm:$0xff]
    %v118 = vld [vmem:[#allocation3 + $0x78] sm:$0xff]
    %v119 = vld [vmem:[%s4] sm:$0x1]
    %v121 = vlaneseq
    %v122 = vshrl.u32 %v121, 7
    %v123 = vsub.s32 0, %v122
    %v124 = vrot.slane %v119, %v123
    %126 = vmatprep.subr.mxu0 0.0
    %127 = vmatpush1.msra.mxu0 %v118
    %128 = vmatprep.subr.mxu0 0.0
    %129 = vmatpush1.msra.mxu0 %v117
    %130 = vmatprep.subr.mxu0 0.0
    %131 = vmatpush1.msra.mxu0 %v116
    %132 = vmatprep.subr.mxu0 0.0
    %133 = vmatpush1.msra.mxu0 %v115
    %134 = vmatprep.subr.mxu0 0.0
    %135 = vmatpush1.msra.mxu0 %v114
    %136 = vmatprep.subr.mxu0 0.0
    %137 = vmatpush1.msra.mxu0 %v113
    %138 = vmatprep.subr.mxu0 0.0
    %139 = vmatpush1.msra.mxu0 %v112
    %140 = vmatprep.subr.mxu0 0.0
    %141 = vmatpush1.msra.mxu0 %v111
    %142 = vmatprep.subr.mxu0 0.0
    %143 = vmatpush1.msra.mxu0 %v110
    %144 = vmatprep.subr.mxu0 0.0
    %145 = vmatpush1.msra.mxu0 %v109
    %146 = vmatprep.subr.mxu0 0.0
    %147 = vmatpush1.msra.mxu0 %v108
    %148 = vmatprep.subr.mxu0 0.0
    %149 = vmatpush1.msra.mxu0 %v107
    %150 = vmatprep.subr.mxu0 0.0
    %151 = vmatpush1.msra.mxu0 %v106
    %152 = vmatprep.subr.mxu0 0.0
    %153 = vmatpush1.msra.mxu0 %v105
    %154 = vmatprep.subr.mxu0 0.0
    %155 = vmatpush1.msra.mxu0 %v104
    %156 = vmatprep.subr.mxu0 0.0
    %157 = vmatpush1.msra.mxu0 %v103
    %158 = vmatprep.subr.mxu0 0.0
    %159 = vmatpush2.msra.mxu0 0.0
    %160 = vmatprep.subr.mxu0 0.0
    %161 = vmatpush2.msra.mxu0 0.0
    %162 = vmatprep.subr.mxu0 0.0
    %163 = vmatpush2.msra.mxu0 0.0
    %164 = vmatprep.subr.mxu0 0.0
    %165 = vmatpush2.msra.mxu0 0.0
    %166 = vmatprep.subr.mxu0 0.0
    %167 = vmatpush2.msra.mxu0 0.0
    %168 = vmatprep.subr.mxu0 0.0
    %169 = vmatpush2.msra.mxu0 0.0
    %170 = vmatprep.subr.mxu0 0.0
    %171 = vmatpush2.msra.mxu0 0.0
    %172 = vmatprep.subr.mxu0 0.0
    %173 = vmatpush2.msra.mxu0 0.0
    %174 = vmatprep.subr.mxu0 0.0
    %175 = vmatpush2.msra.mxu0 0.0
    %176 = vmatprep.subr.mxu0 0.0
    %177 = vmatpush2.msra.mxu0 0.0
    %178 = vmatprep.subr.mxu0 0.0
    %179 = vmatpush2.msra.mxu0 0.0
    %180 = vmatprep.subr.mxu0 0.0
    %181 = vmatpush2.msra.mxu0 0.0
    %182 = vmatprep.subr.mxu0 0.0
    %183 = vmatpush2.msra.mxu0 0.0
    %184 = vmatprep.subr.mxu0 0.0
    %185 = vmatpush2.msra.mxu0 0.0
    %186 = vmatprep.subr.mxu0 0.0
    %187 = vmatpush2.msra.mxu0 0.0
    %188 = vmatprep.subr.mxu0 0.0
    %189 = vmatpush2.msra.mxu0 0.0
    %190 = vmatprep.mubr.f32.mxu0 0.0
    %191 = vmatmul.mubr.f32.gmra.mxu0 %v102
    %v192 = vpop.f32.mrf.mxu0
    %v193 = vadd.f32 %v124, %v192
    %v194 = vpop.f32.mrf.mxu0
    %195 = vdwg.mxu0
    %v196 = vmax.f32 %v193, 0.0
    %v197 = vld [vmem:[#allocation5] sm:$0xff]
    %v198 = vld [vmem:[#allocation5 + $0x8] sm:$0xff]
    %v199 = vld [vmem:[#allocation5 + $0x10] sm:$0xff]
    %v200 = vld [vmem:[#allocation5 + $0x18] sm:$0xff]
    %v201 = vld [vmem:[#allocation5 + $0x20] sm:$0xff]
    %v202 = vld [vmem:[#allocation5 + $0x28] sm:$0xff]
    %v203 = vld [vmem:[#allocation5 + $0x30] sm:$0xff]
    %v204 = vld [vmem:[#allocation5 + $0x38] sm:$0xff]
    %v205 = vld [vmem:[#allocation5 + $0x40] sm:$0xff]
    %v206 = vld [vmem:[#allocation5 + $0x48] sm:$0xff]
    %v207 = vld [vmem:[#allocation5 + $0x50] sm:$0xff]
    %v208 = vld [vmem:[#allocation5 + $0x58] sm:$0xff]
    %v209 = vld [vmem:[#allocation5 + $0x60] sm:$0xff]
    %v210 = vld [vmem:[#allocation5 + $0x68] sm:$0xff]
    %v211 = vld [vmem:[#allocation5 + $0x70] sm:$0xff]
    %v212 = vld [vmem:[#allocation5 + $0x78] sm:$0xff]
    %v213 = vld [vmem:[%s6] sm:$0x1]
    %v215 = vlaneseq
    %v216 = vshrl.u32 %v215, 7
    %v217 = vsub.s32 0, %v216
    %v218 = vrot.slane %v213, %v217
    %220 = vmatprep.subr.mxu0 0.0
    %221 = vmatpush1.msra.mxu0 %v212
    %222 = vmatprep.subr.mxu0 0.0
    %223 = vmatpush1.msra.mxu0 %v211
    %224 = vmatprep.subr.mxu0 0.0
    %225 = vmatpush1.msra.mxu0 %v210
    %226 = vmatprep.subr.mxu0 0.0
    %227 = vmatpush1.msra.mxu0 %v209
    %228 = vmatprep.subr.mxu0 0.0
    %229 = vmatpush1.msra.mxu0 %v208
    %230 = vmatprep.subr.mxu0 0.0
    %231 = vmatpush1.msra.mxu0 %v207
    %232 = vmatprep.subr.mxu0 0.0
    %233 = vmatpush1.msra.mxu0 %v206
    %234 = vmatprep.subr.mxu0 0.0
    %235 = vmatpush1.msra.mxu0 %v205
    %236 = vmatprep.subr.mxu0 0.0
    %237 = vmatpush1.msra.mxu0 %v204
    %238 = vmatprep.subr.mxu0 0.0
    %239 = vmatpush1.msra.mxu0 %v203
    %240 = vmatprep.subr.mxu0 0.0
    %241 = vmatpush1.msra.mxu0 %v202
    %242 = vmatprep.subr.mxu0 0.0
    %243 = vmatpush1.msra.mxu0 %v201
    %244 = vmatprep.subr.mxu0 0.0
    %245 = vmatpush1.msra.mxu0 %v200
    %246 = vmatprep.subr.mxu0 0.0
    %247 = vmatpush1.msra.mxu0 %v199
    %248 = vmatprep.subr.mxu0 0.0
    %249 = vmatpush1.msra.mxu0 %v198
    %250 = vmatprep.subr.mxu0 0.0
    %251 = vmatpush1.msra.mxu0 %v197
    %252 = vmatprep.subr.mxu0 0.0
    %253 = vmatpush2.msra.mxu0 0.0
    %254 = vmatprep.subr.mxu0 0.0
    %255 = vmatpush2.msra.mxu0 0.0
    %256 = vmatprep.subr.mxu0 0.0
    %257 = vmatpush2.msra.mxu0 0.0
    %258 = vmatprep.subr.mxu0 0.0
    %259 = vmatpush2.msra.mxu0 0.0
    %260 = vmatprep.subr.mxu0 0.0
    %261 = vmatpush2.msra.mxu0 0.0
    %262 = vmatprep.subr.mxu0 0.0
    %263 = vmatpush2.msra.mxu0 0.0
    %264 = vmatprep.subr.mxu0 0.0
    %265 = vmatpush2.msra.mxu0 0.0
    %266 = vmatprep.subr.mxu0 0.0
    %267 = vmatpush2.msra.mxu0 0.0
    %268 = vmatprep.subr.mxu0 0.0
    %269 = vmatpush2.msra.mxu0 0.0
    %270 = vmatprep.subr.mxu0 0.0
    %271 = vmatpush2.msra.mxu0 0.0
    %272 = vmatprep.subr.mxu0 0.0
    %273 = vmatpush2.msra.mxu0 0.0
    %274 = vmatprep.subr.mxu0 0.0
    %275 = vmatpush2.msra.mxu0 0.0
    %276 = vmatprep.subr.mxu0 0.0
    %277 = vmatpush2.msra.mxu0 0.0
    %278 = vmatprep.subr.mxu0 0.0
    %279 = vmatpush2.msra.mxu0 0.0
    %280 = vmatprep.subr.mxu0 0.0
    %281 = vmatpush2.msra.mxu0 0.0
    %282 = vmatprep.subr.mxu0 0.0
    %283 = vmatpush2.msra.mxu0 0.0
    %284 = vmatprep.mubr.f32.mxu0 0.0
    %285 = vmatmul.mubr.f32.gmra.mxu0 %v196
    %v286 = vpop.f32.mrf.mxu0
    %v287 = vadd.f32 %v218, %v286
    %v288 = vpop.f32.mrf.mxu0
    %289 = vdwg.mxu0
    %v290 = vadd.f32 %v287, 3.0
    %v291 = vmax.f32 %v290, 0.0
    %v292 = vmin.f32 %v291, 6.0
    %v293 = vmul.f32 %v287, %v292
    %v294 = vmul.f32 %v293, 0.16666667
    %v295 = vld [vmem:[%s7] sm:$0x1]
    %v297 = vlaneseq
    %v298 = vshrl.u32 %v297, 7
    %v299 = vsub.s32 0, %v298
    %v300 = vrot.slane %v295, %v299
    %v302 = vmul.f32 %v294, %v300
    %303 = vadd.xlane.f32.xlu0 %v302
    %v304 = vpop.xlane.xlu0 %303
    %v305 = vld [vmem:[#allocation2] sm:$0x1]
    %v307 = vlaneseq
    %v308 = vshrl.u32 %v307, 7
    %v309 = vsub.s32 0, %v308
    %v310 = vrot.slane %v305, %v309
    %v312 = vadd.f32 %v304, %v310
    %v313 = vtanh.pop %v312
    %vm314 = vcmask 7168
    %315 = vst.msk [vmem:[%s9] sm:$0xff] %vm314, %v313
    // Predicated region
    $region46: #{tpu_custom_call.1} parent=1 // pred_check
      _
    $region47: #{tpu_custom_call.1} parent=1 // pred_check_branch
      %317 = sbr.rel (0) target = $region49
    $region48: #{tpu_custom_call.1} parent=1 // pred_region
      _
    $region49: #{tpu_custom_call.1} parent=1 // pred_fallthru
      _
    // Predicated region
    $region50: #{tpu_custom_call.1} parent=1 // pred_check
      _
    $region51: #{tpu_custom_call.1} parent=1 // pred_check_branch
      %319 = sbr.rel (0) target = $region53
    $region52: #{tpu_custom_call.1} parent=1 // pred_region
      _
    $region53: #{tpu_custom_call.1} parent=1 // pred_fallthru
      _
    %320 = vsyncpa [#allocation4], 1
    %321 = vsyncpa [#allocation6], 1

</llo_original>
